<compile_context>
chip_gen: v5e
topology: v5e:2x2
jax: 0.10.0
libtpu: 0.0.40
codegen_flags: <defaults>
</compile_context>

<pallas_src>
import jax
import jax.numpy as jnp
from jax.experimental import pallas as pl
from jax.experimental.pallas import tpu as pltpu


def _round_up(x, m):
    return ((x + m - 1) // m) * m


def _mf_kernel(sel_ref, item_t_ref, seq_ref, pref_ref, loss_ref):
    # sel_ref:    [TB, C]   bf16  selected user embeddings (batch tile)
    # item_t_ref: [C, TI]   bf16  pre-transposed item embeddings (item tile)
    # seq_ref:    [TB, L]   int32 positive item ids (-1 for padded rows)
    # pref_ref:   [TB, TI]  f32   preference scores (lane-dense output tile)
    # loss_ref:   [1,1,1]   f32   per-batch-tile loss accumulator
    it = pl.program_id(1)
    tile_i = pref_ref.shape[1]

    # MXU: [TB, C] @ [C, TI] -> f32 accumulation, no in-kernel transpose.
    p = jnp.dot(sel_ref[...], item_t_ref[...],
                preferred_element_type=jnp.float32)
    pref_ref[...] = p

    # Build the positive-item mask for this item tile from the seq ids (VPU).
    item_ids = jax.lax.broadcasted_iota(jnp.int32, (1, tile_i), 1) + it * tile_i
    seq_ids = seq_ref[...]                                   # [TB, L] int32
    matched = jnp.zeros(p.shape, dtype=jnp.bool_)
    for l in range(seq_ids.shape[1]):                        # L is tiny; unrolled
        matched = jnp.logical_or(matched, seq_ids[:, l:l + 1] == item_ids)
    m = matched.astype(jnp.float32)

    # sum(m*(p-1)^2 + (1-m)*p^2) == sum(p*(p - 2m) + m)   (fused VPU form)
    tile_loss = jnp.sum(p * (p - 2.0 * m) + m)

    @pl.when(it == 0)
    def _():
        loss_ref[...] = jnp.zeros_like(loss_ref)

    loss_ref[...] += tile_loss


def mf_forward(user_emb, item_emb, center_uid, seq, training=True,
               tile_b=256, tile_i=512):
    """Pallas implementation of MF.forward.

    user_emb:   [user_num, in_channel] float32
    item_emb:   [item_num, in_channel] float32
    center_uid: [B] int32
    seq:        [B, L] int32 (positive item ids per user)
    """
    B = center_uid.shape[0]
    item_num, C = item_emb.shape
    L = seq.shape[1]

    # Tile sizes: lane-dense item tiles (multiple of 128), sublane-aligned batch.
    tile_b = min(tile_b, _round_up(max(B, 1), 8))
    tile_i = min(tile_i, _round_up(item_num, 128))
    b_pad = _round_up(B, tile_b)
    i_pad = _round_up(item_num, tile_i)
    grid_b = b_pad // tile_b
    grid_i = i_pad // tile_i

    # Glue (XLA): user-row gather, zero padding, bf16 cast, one-time transpose.
    sel = user_emb[center_uid].astype(jnp.bfloat16)               # [B, C]
    sel = jnp.pad(sel, ((0, b_pad - B), (0, 0)))                  # [B_pad, C]
    item_t = jnp.pad(item_emb, ((0, i_pad - item_num), (0, 0)))   # [I_pad, C]
    item_t = item_t.astype(jnp.bfloat16).T                        # [C, I_pad]
    seq_p = jnp.pad(seq.astype(jnp.int32), ((0, b_pad - B), (0, 0)),
                    constant_values=-1)                           # [B_pad, L]

    flops = 2 * b_pad * i_pad * C
    bytes_accessed = (sel.size * 2 + item_t.size * 2 * grid_b
                      + seq_p.size * 4 + b_pad * i_pad * 4 + grid_b * 4)

    pref_pad, loss_parts = pl.pallas_call(
        _mf_kernel,
        out_shape=(
            jax.ShapeDtypeStruct((b_pad, i_pad), jnp.float32),
            jax.ShapeDtypeStruct((grid_b, 1, 1), jnp.float32),
        ),
        grid_spec=pltpu.PrefetchScalarGridSpec(
            num_scalar_prefetch=0,
            grid=(grid_b, grid_i),
            in_specs=[
                pl.BlockSpec((tile_b, C), lambda b, i: (b, 0)),
                pl.BlockSpec((C, tile_i), lambda b, i: (0, i)),
                pl.BlockSpec((tile_b, L), lambda b, i: (b, 0)),
            ],
            out_specs=(
                pl.BlockSpec((tile_b, tile_i), lambda b, i: (b, i)),
                pl.BlockSpec((1, 1, 1), lambda b, i: (b, 0, 0)),
            ),
        ),
        compiler_params=pltpu.CompilerParams(
            dimension_semantics=("parallel", "arbitrary")),
        cost_estimate=pl.CostEstimate(
            flops=flops, transcendentals=0, bytes_accessed=bytes_accessed),
    )(sel, item_t, seq_p)

    pref = pref_pad[:B, :item_num]
    if training:
        return jnp.sum(loss_parts), pref
    return pref


def xavier_uniform(key, shape):
    fan_out, fan_in = shape
    bound = jnp.sqrt(6.0 / (fan_in + fan_out))
    return jax.random.uniform(key, shape, jnp.float32, -bound, bound)


if __name__ == "__main__":
    in_channel, user_num, item_num = 32, 16, 64
    batch, seq_len = 2, 8

    key = jax.random.PRNGKey(0)
    k_user, k_item, k_uid, k_seq = jax.random.split(key, 4)

    user_emb = xavier_uniform(k_user, (user_num, in_channel))
    item_emb = xavier_uniform(k_item, (item_num, in_channel))

    center_uid = jax.random.randint(k_uid, (batch,), 0, user_num, dtype=jnp.int32)
    seq = jax.random.randint(k_seq, (batch, seq_len), 0, item_num, dtype=jnp.int32)

    loss, pref = mf_forward(user_emb, item_emb, center_uid, seq, training=True)
    jax.block_until_ready((loss, pref))

    # Reference in plain JAX, using the same bf16-cast matmul inputs.
    sel_bf = user_emb[center_uid].astype(jnp.bfloat16)
    item_bf = item_emb.astype(jnp.bfloat16)
    pref_ref = jnp.dot(sel_bf, item_bf.T, preferred_element_type=jnp.float32)
    mask = jnp.zeros((batch, item_num), jnp.float32)
    mask = mask.at[jnp.arange(batch)[:, None], seq].set(1.0)
    loss_ref = jnp.sum(mask * (pref_ref - 1.0) ** 2 + (1.0 - mask) * pref_ref ** 2)

    assert pref.shape == (batch, item_num)
    assert jnp.allclose(pref, pref_ref, atol=1e-3, rtol=1e-3), "pref mismatch"
    assert jnp.allclose(loss, loss_ref, atol=1e-2, rtol=1e-3), "loss mismatch"

    print("KERNEL_OK")
</pallas_src>

<mosaic_0001>
module attributes {stable_mosaic.version = 11 : i64} {
  func.func @_mf_kernel(%arg0: i32, %arg1: i32, %arg2: memref<8x32xbf16, #tpu.memory_space<vmem>>, %arg3: memref<32x128xbf16, #tpu.memory_space<vmem>>, %arg4: memref<8x8xi32, #tpu.memory_space<vmem>>, %arg5: memref<8x128xf32, #tpu.memory_space<vmem>>, %arg6: memref<1x1x1xf32, #tpu.memory_space<vmem>>) attributes {dimension_semantics = [#tpu.dimension_semantics<parallel>, #tpu.dimension_semantics<arbitrary>], iteration_bounds = array<i64: 1, 1>, scalar_prefetch = 0 : i64, scratch_operands = 0 : i64, tpu.core_type = #tpu.core_type<tc>, window_params = [{transform_indices = @transform_0, window_bounds = array<i64: 8, 32>}, {transform_indices = @transform_1, window_bounds = array<i64: 32, 128>}, {transform_indices = @transform_2, window_bounds = array<i64: 8, 8>}, {transform_indices = @transform_3, window_bounds = array<i64: 8, 128>}, {transform_indices = @transform_4, window_bounds = array<i64: 1, 1, 1>}]} {
    %c0 = arith.constant 0 : index
    %c0_0 = arith.constant 0 : index
    %0 = vector.load %arg2[%c0, %c0_0] : memref<8x32xbf16, #tpu.memory_space<vmem>>, vector<8x32xbf16>
    %c0_1 = arith.constant 0 : index
    %c0_2 = arith.constant 0 : index
    %1 = vector.load %arg3[%c0_1, %c0_2] : memref<32x128xbf16, #tpu.memory_space<vmem>>, vector<32x128xbf16>
    %cst = arith.constant dense<0.000000e+00> : vector<8x128xf32>
    %2 = tpu.matmul %0, %1, %cst {dimension_numbers = #tpu.dot_dimension_numbers<[1], [0], [0], [1], [0, 0, 1, 1], [], []>} : vector<8x32xbf16>, vector<32x128xbf16>, vector<8x128xf32> -> vector<8x128xf32>
    %c0_3 = arith.constant 0 : index
    %c0_4 = arith.constant 0 : index
    %3 = vector.load %arg5[%c0_3, %c0_4] : memref<8x128xf32, #tpu.memory_space<vmem>>, vector<8x128xf32>
    tpu.vector_store %arg5[%c0_3, %c0_4], %2 {strides = array<i32>} : memref<8x128xf32, #tpu.memory_space<vmem>>, vector<8x128xf32>,
    %4 = tpu.iota {dimensions = array<i32: 1>} : vector<1x128xi32>
    %c128_i32 = arith.constant 128 : i32
    %5 = arith.muli %arg1, %c128_i32 : i32
    %6 = vector.broadcast %5 : i32 to vector<1x128xi32>
    %7 = arith.addi %4, %6 : vector<1x128xi32>
    %c0_5 = arith.constant 0 : index
    %c0_6 = arith.constant 0 : index
    %8 = vector.load %arg4[%c0_5, %c0_6] : memref<8x8xi32, #tpu.memory_space<vmem>>, vector<8x8xi32>
    %false = arith.constant false
    %9 = vector.broadcast %false : i1 to vector<8x128xi1>
    %10 = vector.extract_strided_slice %8 {offsets = [0, 0], sizes = [8, 1], strides = [1, 1]} : vector<8x8xi32> to vector<8x1xi32>
    %11 = vector.broadcast %10 : vector<8x1xi32> to vector<8x128xi32>
    %12 = vector.broadcast %7 : vector<1x128xi32> to vector<8x128xi32>
    %13 = arith.cmpi eq, %11, %12 : vector<8x128xi32>
    %14 = arith.ori %9, %13 : vector<8x128xi1>
    %15 = vector.extract_strided_slice %8 {offsets = [0, 1], sizes = [8, 1], strides = [1, 1]} : vector<8x8xi32> to vector<8x1xi32>
    %16 = vector.broadcast %15 : vector<8x1xi32> to vector<8x128xi32>
    %17 = vector.broadcast %7 : vector<1x128xi32> to vector<8x128xi32>
    %18 = arith.cmpi eq, %16, %17 : vector<8x128xi32>
    %19 = arith.ori %14, %18 : vector<8x128xi1>
    %20 = vector.extract_strided_slice %8 {offsets = [0, 2], sizes = [8, 1], strides = [1, 1]} : vector<8x8xi32> to vector<8x1xi32>
    %21 = vector.broadcast %20 : vector<8x1xi32> to vector<8x128xi32>
    %22 = vector.broadcast %7 : vector<1x128xi32> to vector<8x128xi32>
    %23 = arith.cmpi eq, %21, %22 : vector<8x128xi32>
    %24 = arith.ori %19, %23 : vector<8x128xi1>
    %25 = vector.extract_strided_slice %8 {offsets = [0, 3], sizes = [8, 1], strides = [1, 1]} : vector<8x8xi32> to vector<8x1xi32>
    %26 = vector.broadcast %25 : vector<8x1xi32> to vector<8x128xi32>
    %27 = vector.broadcast %7 : vector<1x128xi32> to vector<8x128xi32>
    %28 = arith.cmpi eq, %26, %27 : vector<8x128xi32>
    %29 = arith.ori %24, %28 : vector<8x128xi1>
    %30 = vector.extract_strided_slice %8 {offsets = [0, 4], sizes = [8, 1], strides = [1, 1]} : vector<8x8xi32> to vector<8x1xi32>
    %31 = vector.broadcast %30 : vector<8x1xi32> to vector<8x128xi32>
    %32 = vector.broadcast %7 : vector<1x128xi32> to vector<8x128xi32>
    %33 = arith.cmpi eq, %31, %32 : vector<8x128xi32>
    %34 = arith.ori %29, %33 : vector<8x128xi1>
    %35 = vector.extract_strided_slice %8 {offsets = [0, 5], sizes = [8, 1], strides = [1, 1]} : vector<8x8xi32> to vector<8x1xi32>
    %36 = vector.broadcast %35 : vector<8x1xi32> to vector<8x128xi32>
    %37 = vector.broadcast %7 : vector<1x128xi32> to vector<8x128xi32>
    %38 = arith.cmpi eq, %36, %37 : vector<8x128xi32>
    %39 = arith.ori %34, %38 : vector<8x128xi1>
    %40 = vector.extract_strided_slice %8 {offsets = [0, 6], sizes = [8, 1], strides = [1, 1]} : vector<8x8xi32> to vector<8x1xi32>
    %41 = vector.broadcast %40 : vector<8x1xi32> to vector<8x128xi32>
    %42 = vector.broadcast %7 : vector<1x128xi32> to vector<8x128xi32>
    %43 = arith.cmpi eq, %41, %42 : vector<8x128xi32>
    %44 = arith.ori %39, %43 : vector<8x128xi1>
    %45 = vector.extract_strided_slice %8 {offsets = [0, 7], sizes = [8, 1], strides = [1, 1]} : vector<8x8xi32> to vector<8x1xi32>
    %46 = vector.broadcast %45 : vector<8x1xi32> to vector<8x128xi32>
    %47 = vector.broadcast %7 : vector<1x128xi32> to vector<8x128xi32>
    %48 = arith.cmpi eq, %46, %47 : vector<8x128xi32>
    %49 = arith.ori %44, %48 : vector<8x128xi1>
    %50 = arith.extui %49 : vector<8x128xi1> to vector<8x128xi32>
    %51 = arith.sitofp %50 : vector<8x128xi32> to vector<8x128xf32>
    %cst_7 = arith.constant 2.000000e+00 : f32
    %52 = vector.broadcast %cst_7 : f32 to vector<8x128xf32>
    %53 = arith.mulf %52, %51 : vector<8x128xf32>
    %54 = arith.subf %2, %53 : vector<8x128xf32>
    %55 = arith.mulf %2, %54 : vector<8x128xf32>
    %56 = arith.addf %55, %51 : vector<8x128xf32>
    %57 = vector.shape_cast %56 : vector<8x128xf32> to vector<1x8x128xf32>
    %cst_8 = arith.constant dense<0.000000e+00> : vector<1xf32>
    %58 = vector.multi_reduction <add>, %57, %cst_8 [1, 2] : vector<1x8x128xf32> to vector<1xf32>
    %59 = vector.shape_cast %58 : vector<1xf32> to vector<1x1x1xf32>
    %60 = vector.extract %59[0, 0, 0] : f32 from vector<1x1x1xf32>
    %c0_i32 = arith.constant 0 : i32
    %61 = arith.cmpi eq, %arg1, %c0_i32 : i32
    %62 = arith.extui %61 : i1 to i32
    %c0_i32_9 = arith.constant 0 : i32
    %63 = arith.cmpi ne, %62, %c0_i32_9 : i32
    scf.if %63 {
      %cst_16 = arith.constant 0.000000e+00 : f32
      %68 = vector.broadcast %cst_16 : f32 to vector<1x1x1xf32>
      %c0_17 = arith.constant 0 : index
      %c0_18 = arith.constant 0 : index
      %c0_19 = arith.constant 0 : index
      %69 = vector.load %arg6[%c0_17, %c0_18, %c0_19] : memref<1x1x1xf32, #tpu.memory_space<vmem>>, vector<1x1x1xf32>
      tpu.vector_store %arg6[%c0_17, %c0_18, %c0_19], %68 {strides = array<i32>} : memref<1x1x1xf32, #tpu.memory_space<vmem>>, vector<1x1x1xf32>,
    } else {
    }
    %c0_10 = arith.constant 0 : index
    %c0_11 = arith.constant 0 : index
    %c0_12 = arith.constant 0 : index
    %64 = vector.load %arg6[%c0_10, %c0_11, %c0_12] : memref<1x1x1xf32, #tpu.memory_space<vmem>>, vector<1x1x1xf32>
    %65 = vector.broadcast %60 : f32 to vector<1x1x1xf32>
    %66 = arith.addf %64, %65 : vector<1x1x1xf32>
    %c0_13 = arith.constant 0 : index
    %c0_14 = arith.constant 0 : index
    %c0_15 = arith.constant 0 : index
    %67 = vector.load %arg6[%c0_13, %c0_14, %c0_15] : memref<1x1x1xf32, #tpu.memory_space<vmem>>, vector<1x1x1xf32>
    tpu.vector_store %arg6[%c0_13, %c0_14, %c0_15], %66 {strides = array<i32>} : memref<1x1x1xf32, #tpu.memory_space<vmem>>, vector<1x1x1xf32>,
    return
  }
  func.func @transform_0(%arg0: i32, %arg1: i32) -> (i32, i32) {
    %c0_i32 = arith.constant 0 : i32
    %c0_i32_0 = arith.constant 0 : i32
    return %arg0, %c0_i32 : i32, i32
  }
  func.func @transform_1(%arg0: i32, %arg1: i32) -> (i32, i32) {
    %c0_i32 = arith.constant 0 : i32
    %c0_i32_0 = arith.constant 0 : i32
    return %c0_i32, %arg1 : i32, i32
  }
  func.func @transform_2(%arg0: i32, %arg1: i32) -> (i32, i32) {
    %c0_i32 = arith.constant 0 : i32
    %c0_i32_0 = arith.constant 0 : i32
    return %arg0, %c0_i32 : i32, i32
  }
  func.func @transform_3(%arg0: i32, %arg1: i32) -> (i32, i32) {
    %c0_i32 = arith.constant 0 : i32
    return %arg0, %arg1 : i32, i32
  }
  func.func @transform_4(%arg0: i32, %arg1: i32) -> (i32, i32, i32) {
    %c0_i32 = arith.constant 0 : i32
    %c0_i32_0 = arith.constant 0 : i32
    %c0_i32_1 = arith.constant 0 : i32
    return %arg0, %c0_i32, %c0_i32_0 : i32, i32, i32
  }
}

</mosaic_0001>

<llo_original>
// kernel: tpu_custom_call.1
$region0: #{tpu_custom_call.1}
  #allocation0 [shape = 'u32[]', space=smem, size = 0x4, offset = 0x4, fixed_abs, tag = 'smem constant byte address 0x4 - core index']
  #allocation1 [shape = 'u32[72,128]{1,0:T(1,128)}', space=vmem, size = 0x9000, scoped, tag = 'internal scratch']
  %s0 = inlined_call_operand.hbm [shape: bf16[8,32], index: 0, kind: input, shape index: {}]
  %s1 = inlined_call_operand.hbm [shape: bf16[32,128], index: 1, kind: input, shape index: {}]
  %s2 = inlined_call_operand.hbm [shape: s32[8,8], index: 2, kind: input, shape index: {}]
  %s3 = inlined_call_operand.hbm [shape: f32[8,128], index: 3, kind: output, shape index: {0}]
  %s4 = inlined_call_operand.hbm [shape: f32[1,1,1], index: 4, kind: output, shape index: {1}]
  %5 = xla_tuple %s3, %s4
  %s6 = sld [smem:[#allocation0]]
  $region46: #{tpu_custom_call.1} parent=0
    _
  %s8 = ssub.s32 1, %s6
  %s9 = scalar_select 0, %s8, %s6
  $region1: #{tpu_custom_call.1} parent=0
    #allocation2 [shape = 'u8[2048]{0}', space=vmem, size = 0x800, scoped, tag = 'input window, operand 0, single buffered']
    #allocation3 [shape = 's32[1]{0}', space=sflag, size = 0x4, scoped, tag = 'scoped memory for tpu_custom_call.1']
    #allocation4 [shape = 's32[1]{0}', space=sflag, size = 0x4, scoped, tag = 'scoped memory for tpu_custom_call.1']
    #allocation5 [shape = 'u8[8192]{0}', space=vmem, size = 0x2000, scoped, tag = 'input window, operand 1, single buffered']
    #allocation6 [shape = 's32[1]{0}', space=sflag, size = 0x4, scoped, tag = 'scoped memory for tpu_custom_call.1']
    #allocation7 [shape = 'u8[4096]{0}', space=vmem, size = 0x1000, scoped, tag = 'input window, operand 2, single buffered']
    #allocation8 [shape = 'u8[4096]{0}', space=vmem, size = 0x1000, scoped, tag = 'output window, operand 0, single buffered']
    #allocation9 [shape = 'u8[512]{0}', space=vmem, size = 0x400, scoped, tag = 'output window, operand 1, single buffered']
    #allocation10 [shape = 's32[1]{0}', space=sflag, size = 0x4, scoped, tag = 'scoped memory for tpu_custom_call.1']
    %10 = vsyncpa [#allocation3], 0
    %11 = vsyncpa [#allocation6], 0
    %12 = vsyncpa [#allocation4], 0
    %13 = vsyncpa [#allocation10], 0
    // Predicated region
    $region2: #{tpu_custom_call.1} parent=1 // pred_check
      _
    $region3: #{tpu_custom_call.1} parent=1 // pred_check_branch
      %15 = sbr.rel (0) target = $region5
    $region4: #{tpu_custom_call.1} parent=1 // pred_region
      %17 = vsyncadd [#allocation3], 0
      %s19 = sshll.u32 %s0, 4
      %s20 = int_to_ptr.hbm [resolvable:$true] %s19
      %s21 = sshll.u32 [#allocation2], 4
      %s22 = int_to_ptr.vmem [resolvable:$true] %s21
      %24 = dma.hbm_to_vmem [thread:$0]  %s20, 64, %s22, [#allocation3]
    $region5: #{tpu_custom_call.1} parent=1 // pred_fallthru
      _
    // Predicated region
    $region6: #{tpu_custom_call.1} parent=1 // pred_check
      _
    $region7: #{tpu_custom_call.1} parent=1 // pred_check_branch
      %26 = sbr.rel (0) target = $region9
    $region8: #{tpu_custom_call.1} parent=1 // pred_region
      %28 = vsyncadd [#allocation6], 0
      %s29 = sshll.u32 %s1, 4
      %s30 = int_to_ptr.hbm [resolvable:$true] %s29
      %s31 = sshll.u32 [#allocation5], 4
      %s32 = int_to_ptr.vmem [resolvable:$true] %s31
      %37 = dma.hbm_to_vmem [thread:$0]  %s30, 256, %s32, [#allocation6], 64, 64, 4
    $region9: #{tpu_custom_call.1} parent=1 // pred_fallthru
      _
    // Predicated region
    $region10: #{tpu_custom_call.1} parent=1 // pred_check
      _
    $region11: #{tpu_custom_call.1} parent=1 // pred_check_branch
      %39 = sbr.rel (0) target = $region13
    $region12: #{tpu_custom_call.1} parent=1 // pred_region
      %41 = vsyncadd [#allocation6], 0
      %s43 = sshll.u32 %s2, 4
      %s44 = int_to_ptr.hbm [resolvable:$true] %s43
      %s45 = sshll.u32 [#allocation7], 4
      %s46 = int_to_ptr.vmem [resolvable:$true] %s45
      %48 = dma.hbm_to_vmem [thread:$0]  %s44, 128, %s46, [#allocation6]
    $region13: #{tpu_custom_call.1} parent=1 // pred_fallthru
      _
    // Predicated region
    $region14: #{tpu_custom_call.1} parent=1 // pred_check
      _
    $region15: #{tpu_custom_call.1} parent=1 // pred_check_branch
      %50 = sbr.rel (0) target = $region17
    $region16: #{tpu_custom_call.1} parent=1 // pred_region
      %52 = dma.done [#allocation3], 64
    $region17: #{tpu_custom_call.1} parent=1 // pred_fallthru
      _
    // Predicated region
    $region18: #{tpu_custom_call.1} parent=1 // pred_check
      _
    $region19: #{tpu_custom_call.1} parent=1 // pred_check_branch
      %54 = sbr.rel (0) target = $region21
    $region20: #{tpu_custom_call.1} parent=1 // pred_region
      %56 = dma.done [#allocation6], 256
    $region21: #{tpu_custom_call.1} parent=1 // pred_fallthru
      _
    // Predicated region
    $region22: #{tpu_custom_call.1} parent=1 // pred_check
      _
    $region23: #{tpu_custom_call.1} parent=1 // pred_check_branch
      %58 = sbr.rel (0) target = $region25
    $region24: #{tpu_custom_call.1} parent=1 // pred_region
      %60 = dma.done [#allocation6], 128
    $region25: #{tpu_custom_call.1} parent=1 // pred_fallthru
      _
    %v62 = vld [vmem:[#allocation2] sm:$0xf]
    %v63 = vld [vmem:[#allocation5] sm:$0xf]
    %v64 = vld [vmem:[#allocation5 + $0x4] sm:$0xf]
    %v65 = vld [vmem:[#allocation5 + $0x8] sm:$0xf]
    %v66 = vld [vmem:[#allocation5 + $0xc] sm:$0xf]
    %v71 = vunpack.c.l.b16 %v63
    %v72 = vunpack.c.l.b16 %v64
    %v73 = vunpack.c.l.b16 %v65
    %v74 = vunpack.c.l.b16 %v66
    %v75 = vpack.c.b16 %v72, %v71
    %v76 = vpack.c.b16 %v74, %v73
    %vm79 = vcmask 261120
    %v81 = vsel %vm79, %v62, 0
    %83 = vmatpush.bf16.msra.mxu0 0
    %84 = vmatpush.bf16.msra.mxu0 0
    %85 = vmatpush.bf16.msra.mxu0 0
    %86 = vmatpush.bf16.msra.mxu0 0
    %87 = vmatpush.bf16.msra.mxu0 0
    %88 = vmatpush.bf16.msra.mxu0 0
    %89 = vmatpush.bf16.msra.mxu0 %v76
    %90 = vmatpush.bf16.msra.mxu0 %v75
    %91 = vmatmul.bf16.gmra.mxu0 %v81
    %v92 = vpop.f32.mrf.mxu0
    %v93 = vadd.f32 0.0, %v92
    %v94 = vpop.f32.mrf.mxu0
    %95 = vdwg.mxu0
    %96 = vst [vmem:[#allocation8] sm:$0xff] %v93
    %v97 = vlaneseq
    %v98 = vand.u32 %v97, 127
    %s99 = smul.u32 0, 128
    %v100 = vstv %s99
    %v101 = vadd.s32 %v98, %v100
    %v102 = vld [vmem:[#allocation7] sm:$0xff]
    %103 = vset.pattern.permute.xlu0 0
    %104 = vperm.xlu0 %103, %v102
    %v105 = vpop.permute.xlu0 %104
    %vm106 = vcmp.eq.s32.totalorder %v105, %v101
    %107 = vset.pattern.permute.xlu0 1
    %108 = vperm.xlu0 %107, %v102
    %v109 = vpop.permute.xlu0 %108
    %vm110 = vcmp.eq.s32.totalorder %v109, %v101
    %vm111 = vmor %vm106, %vm110
    %112 = vset.pattern.permute.xlu0 2
    %113 = vperm.xlu0 %112, %v102
    %v114 = vpop.permute.xlu0 %113
    %vm115 = vcmp.eq.s32.totalorder %v114, %v101
    %vm116 = vmor %vm111, %vm115
    %117 = vset.pattern.permute.xlu0 3
    %118 = vperm.xlu0 %117, %v102
    %v119 = vpop.permute.xlu0 %118
    %vm120 = vcmp.eq.s32.totalorder %v119, %v101
    %vm121 = vmor %vm116, %vm120
    %122 = vset.pattern.permute.xlu0 4
    %123 = vperm.xlu0 %122, %v102
    %v124 = vpop.permute.xlu0 %123
    %vm125 = vcmp.eq.s32.totalorder %v124, %v101
    %vm126 = vmor %vm121, %vm125
    %127 = vset.pattern.permute.xlu0 5
    %128 = vperm.xlu0 %127, %v102
    %v129 = vpop.permute.xlu0 %128
    %vm130 = vcmp.eq.s32.totalorder %v129, %v101
    %vm131 = vmor %vm126, %vm130
    %132 = vset.pattern.permute.xlu0 6
    %133 = vperm.xlu0 %132, %v102
    %v134 = vpop.permute.xlu0 %133
    %vm135 = vcmp.eq.s32.totalorder %v134, %v101
    %vm136 = vmor %vm131, %vm135
    %137 = vset.pattern.permute.xlu0 7
    %138 = vperm.xlu0 %137, %v102
    %v139 = vpop.permute.xlu0 %138
    %vm140 = vcmp.eq.s32.totalorder %v139, %v101
    %vm141 = vmor %vm136, %vm140
    %v142 = vsel %vm141, 1, 0
    %v143 = vcvt.s32.f32 %v142
    %v144 = vmul.f32 %v143, 2.0
    %v145 = vsub.f32 %v93, %v144
    %v146 = vmul.f32 %v93, %v145
    %v147 = vadd.f32 %v146, %v143
    %148 = vadd.xlane.f32.xlu0 %v147
    %v149 = vpop.xlane.xlu0 %148
    %v150 = vrot.slane %v149, 4
    %v151 = vadd.f32 %v149, %v150
    %v152 = vrot.slane %v151, 2
    %v153 = vadd.f32 %v151, %v152
    %v154 = vrot.slane %v153, 1
    %v155 = vadd.f32 %v153, %v154
    %s156 = vtos %v155
    %p157 = scmp.eq.s32.totalorder 0, 0
    // Predicated region
    $region26: #{tpu_custom_call.1} parent=1 // pred_check
      %p158 = pneg %p157
    $region27: #{tpu_custom_call.1} parent=1 // pred_check_branch
      %160 = sbr.rel (%p158) target = $region29
    $region28: #{tpu_custom_call.1} parent=1 // pred_region
      %vm161 = vcmask 0
      %162 = vst.msk [vmem:[#allocation9] sm:$0x1] %vm161, 0.0
    $region29: #{tpu_custom_call.1} parent=1 // pred_fallthru
      _
    %v163 = vld [vmem:[#allocation9] sm:$0x1]
    %v164 = vstv %s156
    %v165 = vadd.f32 %v163, %v164
    %vm166 = vcmask 0
    %167 = vst.msk [vmem:[#allocation9] sm:$0x1] %vm166, %v165
    // Predicated region
    $region30: #{tpu_custom_call.1} parent=1 // pred_check
      _
    $region31: #{tpu_custom_call.1} parent=1 // pred_check_branch
      %169 = sbr.rel (0) target = $region33
    $region32: #{tpu_custom_call.1} parent=1 // pred_region
      %171 = vsyncadd [#allocation4], 0
      %s173 = sshll.u32 [#allocation8], 4
      %s174 = int_to_ptr.vmem [resolvable:$true] %s173
      %s175 = sshll.u32 %s3, 4
      %s176 = int_to_ptr.hbm [resolvable:$true] %s175
      %178 = dma.vmem_to_hbm [thread:$0]  %s174, 128, %s176, [#allocation4]
    $region33: #{tpu_custom_call.1} parent=1 // pred_fallthru
      _
    // Predicated region
    $region34: #{tpu_custom_call.1} parent=1 // pred_check
      _
    $region35: #{tpu_custom_call.1} parent=1 // pred_check_branch
      %180 = sbr.rel (0) target = $region37
    $region36: #{tpu_custom_call.1} parent=1 // pred_region
      %182 = vsyncadd [#allocation10], 0
      %s184 = sshll.u32 [#allocation9], 4
      %s185 = int_to_ptr.vmem [resolvable:$true] %s184
      %s186 = sshll.u32 %s4, 4
      %s187 = int_to_ptr.hbm [resolvable:$true] %s186
      %189 = dma.vmem_to_hbm [thread:$0]  %s185, 16, %s187, [#allocation10]
    $region37: #{tpu_custom_call.1} parent=1 // pred_fallthru
      _
    // Predicated region
    $region38: #{tpu_custom_call.1} parent=1 // pred_check
      _
    $region39: #{tpu_custom_call.1} parent=1 // pred_check_branch
      %191 = sbr.rel (0) target = $region41
    $region40: #{tpu_custom_call.1} parent=1 // pred_region
      %193 = dma.done [#allocation4], 128
    $region41: #{tpu_custom_call.1} parent=1 // pred_fallthru
      _
    // Predicated region
    $region42: #{tpu_custom_call.1} parent=1 // pred_check
      _
    $region43: #{tpu_custom_call.1} parent=1 // pred_check_branch
      %195 = sbr.rel (0) target = $region45
    $region44: #{tpu_custom_call.1} parent=1 // pred_region
      %197 = dma.done [#allocation10], 16
    $region45: #{tpu_custom_call.1} parent=1 // pred_fallthru
      _
    %198 = vsyncpa [#allocation3], 1
    %199 = vsyncpa [#allocation6], 1
    %200 = vsyncpa [#allocation4], 1
    %201 = vsyncpa [#allocation10], 1

</llo_original>
